<compile_context>
chip_gen: v7x
topology: tpu7x:2x2x1
jax: 0.10.0
libtpu: 0.0.40
codegen_flags: <defaults>
</compile_context>

<pallas_src>
import jax
import jax.numpy as jnp
from jax.experimental import pallas as pl
from jax.experimental.pallas import tpu as pltpu


def _round_up(x, m):
    return (x + m - 1) // m * m


def _device_kind():
    try:
        return jax.devices()[0].device_kind.lower()
    except Exception:
        return ""


# --------------------------------------------------------------------------
# Kernel
# --------------------------------------------------------------------------
def ffn_kernel(x_ref, w1_ref, b1_ref, w2_ref, b2_ref, o_ref, acc_ref):
    # x_ref : (tile_n, d_model_p)     -- same block for every d_ff chunk (resident)
    # w1_ref: (d_model_p, tile_ff)    -- chunk k of W1 (whole W1 on resident path)
    # b1_ref: (1, tile_ff)            -- chunk k of b1
    # w2_ref: (tile_ff, d_model_p)    -- chunk k of W2
    # b2_ref: (1, d_model_p)          -- full b2 (resident)
    # o_ref : (tile_n, d_model_p)
    # acc_ref: (tile_n, d_model_p) f32 scratch accumulator
    k = pl.program_id(1)

    @pl.when(k == 0)
    def _init():
        # Fold b2 into the accumulator once per row tile.
        acc_ref[...] = jnp.broadcast_to(
            b2_ref[...].astype(jnp.float32), acc_ref.shape)

    h = jnp.dot(x_ref[...], w1_ref[...], preferred_element_type=jnp.float32)
    h = jnp.maximum(h + b1_ref[...].astype(jnp.float32), 0.0)   # ReLU (f32)
    # dropout (eval mode) == identity
    acc_ref[...] += jnp.dot(h.astype(w2_ref.dtype), w2_ref[...],
                            preferred_element_type=jnp.float32)

    @pl.when(k == pl.num_programs(1) - 1)
    def _finalize():
        o_ref[...] = acc_ref[...].astype(o_ref.dtype)


# --------------------------------------------------------------------------
# Tile / VMEM planning (per TPU generation)
# --------------------------------------------------------------------------
def make_ffn_plan(n, d_model, d_ff, out_dtype, compute_dtype):
    kind = _device_kind()
    is_v7 = "v7" in kind
    big_vmem = ("v5" in kind) or ("v6" in kind)          # 128 MiB parts
    vmem_limit = (112 if big_vmem else 56) * 1024 * 1024
    vmem_budget = (96 if big_vmem else 44) * 1024 * 1024  # headroom under the limit

    c_item = jnp.dtype(compute_dtype).itemsize
    o_item = jnp.dtype(out_dtype).itemsize
    sublane = 8 if c_item == 4 else (16 if c_item == 2 else 32)

    d_model_p = _round_up(d_model, 128)

    # Row tile: big enough to push arithmetic intensity past the HBM roofline
    # crossover (v6e ~650 f/B -> 1024 rows; v7x ~310 f/B -> 512 rows suffice).
    target_n = 512 if is_v7 else 1024
    tile_n = min(target_n, _round_up(n, sublane))
    # v7x: keep >= 2 row tiles so both TensorCores get work on the parallel axis.
    if is_v7 and n > tile_n and _round_up(n, tile_n) // tile_n < 2:
        tile_n = max(256, tile_n // 2)

    def fits(t_n, t_ff):
        w = 2 * (2 * d_model_p * t_ff) * c_item            # W1+W2 blocks, x2 buffers
        b = 2 * (t_ff + d_model_p) * c_item                # b1+b2 blocks, x2 buffers
        xb = 2 * t_n * d_model_p * c_item                  # x tile, x2 buffers
        ob = 2 * t_n * d_model_p * o_item                  # out tile, x2 buffers
        acc = t_n * d_model_p * 4                          # f32 scratch accumulator
        return (w + b + xb + ob + acc) <= vmem_budget

    # 1) Resident-weights fast path: whole d_ff in one block (constant index_map
    #    across the grid -> weights DMA'd once, never re-streamed).
    tile_ff = _round_up(d_ff, 128)
    t_n = tile_n
    while not fits(t_n, tile_ff) and t_n > 256:
        t_n = max(256, t_n // 2)
    if not fits(t_n, tile_ff):
        # 2) Streaming fallback: chunk d_ff (1024 -> fewer k steps / fewer
        #    accumulator RMW passes), shrink until footprint fits.
        tile_ff = min(1024, _round_up(d_ff, 128))
        while not fits(t_n, tile_ff) and tile_ff > 256:
            tile_ff //= 2
        while not fits(t_n, tile_ff) and t_n > 256:
            t_n = max(256, t_n // 2)
    tile_n = t_n

    d_ff_p = _round_up(d_ff, tile_ff)
    n_p = _round_up(n, tile_n)
    return dict(tile_n=tile_n, tile_ff=tile_ff, d_model_p=d_model_p,
                d_ff_p=d_ff_p, n_p=n_p, vmem_limit=vmem_limit)


def prepare_ffn_params(plan, w1, b1, w2, b2, compute_dtype):
    """Pad + cast weights once, outside the per-call hot path.

    Pads are skipped entirely when shapes are already TPU-aligned, so this
    costs nothing for standard transformer sizes (d_model/d_ff multiples of 128).
    """
    d_model_p, d_ff_p = plan["d_model_p"], plan["d_ff_p"]

    def pad_cast(a, tgt):
        pads = tuple((0, t - s) for s, t in zip(a.shape, tgt))
        if any(p for _, p in pads):
            a = jnp.pad(a, pads)
        return a.astype(compute_dtype)

    w1_p = pad_cast(w1, (d_model_p, d_ff_p))
    b1_p = pad_cast(b1.reshape(1, -1), (1, d_ff_p))
    w2_p = pad_cast(w2, (d_ff_p, d_model_p))
    b2_p = pad_cast(b2.reshape(1, -1), (1, d_model_p))
    return (w1_p, b1_p, w2_p, b2_p)


# --------------------------------------------------------------------------
# Forward
# --------------------------------------------------------------------------
def ffn_apply(plan, params, x, compute_dtype):
    w1_p, b1_p, w2_p, b2_p = params
    batch, seq, d_model = x.shape
    n = batch * seq
    tile_n, tile_ff = plan["tile_n"], plan["tile_ff"]
    d_model_p, d_ff_p, n_p = plan["d_model_p"], plan["d_ff_p"], plan["n_p"]

    x2d = x.reshape(n, d_model)
    if (n_p, d_model_p) != (n, d_model):
        x2d = jnp.pad(x2d, ((0, n_p - n), (0, d_model_p - d_model)))
    x2d = x2d.astype(compute_dtype)

    grid = (n_p // tile_n, d_ff_p // tile_ff)

    c_item = jnp.dtype(compute_dtype).itemsize
    o_item = jnp.dtype(x.dtype).itemsize
    # Weight bytes are re-streamed once per row tile only on the chunked path.
    w_restream = grid[0] if grid[1] > 1 else 1
    cost = pl.CostEstimate(
        flops=2 * 2 * n_p * d_model_p * d_ff_p,            # two matmuls
        transcendentals=0,
        bytes_accessed=(n_p * d_model_p * (c_item + o_item)
                        + w_restream * 2 * d_model_p * d_ff_p * c_item
                        + (d_ff_p + d_model_p) * c_item))

    out2d = pl.pallas_call(
        ffn_kernel,
        out_shape=jax.ShapeDtypeStruct((n_p, d_model_p), x.dtype),
        grid_spec=pltpu.PrefetchScalarGridSpec(
            num_scalar_prefetch=0,
            grid=grid,
            in_specs=[
                pl.BlockSpec((tile_n, d_model_p), lambda i, k: (i, 0)),   # x tile
                pl.BlockSpec((d_model_p, tile_ff), lambda i, k: (0, k)),  # W1
                pl.BlockSpec((1, tile_ff), lambda i, k: (0, k)),          # b1
                pl.BlockSpec((tile_ff, d_model_p), lambda i, k: (k, 0)),  # W2
                pl.BlockSpec((1, d_model_p), lambda i, k: (0, 0)),        # b2
            ],
            out_specs=pl.BlockSpec((tile_n, d_model_p), lambda i, k: (i, 0)),
            scratch_shapes=[pltpu.VMEM((tile_n, d_model_p), jnp.float32)],
        ),
        compiler_params=pltpu.CompilerParams(
            dimension_semantics=("parallel", "arbitrary"),
            vmem_limit_bytes=plan["vmem_limit"]),
        cost_estimate=cost,
    )(x2d, w1_p, b1_p, w2_p, b2_p)

    return out2d[:n, :d_model].reshape(batch, seq, d_model)


def ffn_forward(x, w1, b1, w2, b2, *, compute_dtype=None):
    """One-shot convenience: plan + weight prep + kernel call.

    For repeated calls with fixed weights, hoist make_ffn_plan /
    prepare_ffn_params and call ffn_apply directly (weights padded/cast once).
    """
    compute_dtype = jnp.dtype(compute_dtype) if compute_dtype is not None else x.dtype
    batch, seq, d_model = x.shape
    d_ff = w1.shape[1]
    n = batch * seq
    plan = make_ffn_plan(n, d_model, d_ff, x.dtype, compute_dtype)
    params = prepare_ffn_params(plan, w1, b1, w2, b2, compute_dtype)
    return ffn_apply(plan, params, x, compute_dtype)


if __name__ == "__main__":
    # Small, deterministic setup consistent with FFN(d_model, d_ff, drop_prob)
    batch, seq = 2, 8
    d_model, d_ff = 32, 64
    drop_prob = 0.1  # unused in eval-mode forward

    key = jax.random.PRNGKey(0)
    kx, k1, k2, k3, k4 = jax.random.split(key, 5)

    x = jax.random.normal(kx, (batch, seq, d_model), dtype=jnp.float32)

    # Deterministic parameter init (uniform like torch default, 1/sqrt(fan_in)),
    # stored as (in, out) = transposed torch layout so the kernel does x @ W.
    lim1 = 1.0 / (d_model ** 0.5)
    lim2 = 1.0 / (d_ff ** 0.5)
    w1 = jax.random.uniform(k1, (d_model, d_ff), jnp.float32, -lim1, lim1)
    b1 = jax.random.uniform(k2, (d_ff,), jnp.float32, -lim1, lim1)
    w2 = jax.random.uniform(k3, (d_ff, d_model), jnp.float32, -lim2, lim2)
    b2 = jax.random.uniform(k4, (d_ff,) * 0 + (d_model,), jnp.float32, -lim2, lim2)

    # Pure-JAX reference
    ref = jnp.maximum(x @ w1 + b1, 0.0) @ w2 + b2

    # f32 path (exact check)
    out = ffn_forward(x, w1, b1, w2, b2)
    out = jax.block_until_ready(out)
    assert out.shape == (batch, seq, d_model)
    assert jnp.allclose(out, ref, atol=1e-4, rtol=1e-4), "f32 mismatch vs reference"

    # bf16-compute path (f32 accumulation) — looser tolerance vs f32 reference
    out_bf16 = ffn_forward(x, w1, b1, w2, b2, compute_dtype=jnp.bfloat16)
    out_bf16 = jax.block_until_ready(out_bf16)
    assert out_bf16.shape == (batch, seq, d_model)
    assert jnp.allclose(out_bf16, ref, atol=3e-2, rtol=3e-2), "bf16 mismatch vs reference"

    print("KERNEL_OK")
</pallas_src>

<mosaic_0001>
module attributes {stable_mosaic.version = 11 : i64} {
  func.func @ffn_kernel(%arg0: i32, %arg1: i32, %arg2: memref<16x128xf32, #tpu.memory_space<vmem>>, %arg3: memref<128x128xf32, #tpu.memory_space<vmem>>, %arg4: memref<1x128xf32, #tpu.memory_space<vmem>>, %arg5: memref<128x128xf32, #tpu.memory_space<vmem>>, %arg6: memref<1x128xf32, #tpu.memory_space<vmem>>, %arg7: memref<16x128xf32, #tpu.memory_space<vmem>>, %arg8: memref<16x128xf32, #tpu.memory_space<vmem>>) attributes {dimension_semantics = [#tpu.dimension_semantics<parallel>, #tpu.dimension_semantics<arbitrary>], iteration_bounds = array<i64: 1, 1>, scalar_prefetch = 0 : i64, scratch_operands = 1 : i64, tpu.core_type = #tpu.core_type<tc>, window_params = [{transform_indices = @transform_0, window_bounds = array<i64: 16, 128>}, {transform_indices = @transform_1, window_bounds = array<i64: 128, 128>}, {transform_indices = @transform_2, window_bounds = array<i64: 1, 128>}, {transform_indices = @transform_3, window_bounds = array<i64: 128, 128>}, {pipeline_mode = #tpu.pipeline_mode<synchronous>, transform_indices = @transform_4, window_bounds = array<i64: 1, 128>}, {transform_indices = @transform_5, window_bounds = array<i64: 16, 128>}]} {
    %c0_i32 = arith.constant 0 : i32
    %0 = arith.cmpi eq, %arg1, %c0_i32 : i32
    %1 = arith.extui %0 : i1 to i32
    %c0_i32_0 = arith.constant 0 : i32
    %2 = arith.cmpi ne, %1, %c0_i32_0 : i32
    scf.if %2 {
      %c0_16 = arith.constant 0 : index
      %c0_17 = arith.constant 0 : index
      %19 = vector.load %arg6[%c0_16, %c0_17] : memref<1x128xf32, #tpu.memory_space<vmem>>, vector<1x128xf32>
      %20 = vector.shape_cast %19 : vector<1x128xf32> to vector<1x128xf32>
      %21 = vector.broadcast %20 : vector<1x128xf32> to vector<16x128xf32>
      %c0_18 = arith.constant 0 : index
      %c0_19 = arith.constant 0 : index
      %22 = vector.load %arg8[%c0_18, %c0_19] : memref<16x128xf32, #tpu.memory_space<vmem>>, vector<16x128xf32>
      tpu.vector_store %arg8[%c0_18, %c0_19], %21 {strides = array<i32>} : memref<16x128xf32, #tpu.memory_space<vmem>>, vector<16x128xf32>,
    } else {
    }
    %c0 = arith.constant 0 : index
    %c0_1 = arith.constant 0 : index
    %3 = vector.load %arg2[%c0, %c0_1] : memref<16x128xf32, #tpu.memory_space<vmem>>, vector<16x128xf32>
    %c0_2 = arith.constant 0 : index
    %c0_3 = arith.constant 0 : index
    %4 = vector.load %arg3[%c0_2, %c0_3] : memref<128x128xf32, #tpu.memory_space<vmem>>, vector<128x128xf32>
    %cst = arith.constant dense<0.000000e+00> : vector<16x128xf32>
    %5 = tpu.matmul %3, %4, %cst {dimension_numbers = #tpu.dot_dimension_numbers<[1], [0], [0], [1], [0, 0, 1, 1], [], []>} : vector<16x128xf32>, vector<128x128xf32>, vector<16x128xf32> -> vector<16x128xf32>
    %c0_4 = arith.constant 0 : index
    %c0_5 = arith.constant 0 : index
    %6 = vector.load %arg4[%c0_4, %c0_5] : memref<1x128xf32, #tpu.memory_space<vmem>>, vector<1x128xf32>
    %7 = vector.broadcast %6 : vector<1x128xf32> to vector<16x128xf32>
    %8 = arith.addf %5, %7 : vector<16x128xf32>
    %cst_6 = arith.constant 0.000000e+00 : f32
    %9 = vector.broadcast %cst_6 : f32 to vector<16x128xf32>
    %10 = arith.maximumf %8, %9 : vector<16x128xf32>
    %c0_7 = arith.constant 0 : index
    %c0_8 = arith.constant 0 : index
    %11 = vector.load %arg8[%c0_7, %c0_8] : memref<16x128xf32, #tpu.memory_space<vmem>>, vector<16x128xf32>
    %c0_9 = arith.constant 0 : index
    %c0_10 = arith.constant 0 : index
    %12 = vector.load %arg5[%c0_9, %c0_10] : memref<128x128xf32, #tpu.memory_space<vmem>>, vector<128x128xf32>
    %cst_11 = arith.constant dense<0.000000e+00> : vector<16x128xf32>
    %13 = tpu.matmul %10, %12, %cst_11 {dimension_numbers = #tpu.dot_dimension_numbers<[1], [0], [0], [1], [0, 0, 1, 1], [], []>} : vector<16x128xf32>, vector<128x128xf32>, vector<16x128xf32> -> vector<16x128xf32>
    %14 = arith.addf %11, %13 : vector<16x128xf32>
    %c0_12 = arith.constant 0 : index
    %c0_13 = arith.constant 0 : index
    %15 = vector.load %arg8[%c0_12, %c0_13] : memref<16x128xf32, #tpu.memory_space<vmem>>, vector<16x128xf32>
    tpu.vector_store %arg8[%c0_12, %c0_13], %14 {strides = array<i32>} : memref<16x128xf32, #tpu.memory_space<vmem>>, vector<16x128xf32>,
    %c0_i32_14 = arith.constant 0 : i32
    %16 = arith.cmpi eq, %arg1, %c0_i32_14 : i32
    %17 = arith.extui %16 : i1 to i32
    %c0_i32_15 = arith.constant 0 : i32
    %18 = arith.cmpi ne, %17, %c0_i32_15 : i32
    scf.if %18 {
      %c0_16 = arith.constant 0 : index
      %c0_17 = arith.constant 0 : index
      %19 = vector.load %arg8[%c0_16, %c0_17] : memref<16x128xf32, #tpu.memory_space<vmem>>, vector<16x128xf32>
      %c0_18 = arith.constant 0 : index
      %c0_19 = arith.constant 0 : index
      %20 = vector.load %arg7[%c0_18, %c0_19] : memref<16x128xf32, #tpu.memory_space<vmem>>, vector<16x128xf32>
      tpu.vector_store %arg7[%c0_18, %c0_19], %19 {strides = array<i32>} : memref<16x128xf32, #tpu.memory_space<vmem>>, vector<16x128xf32>,
    } else {
    }
    return
  }
  func.func @transform_0(%arg0: i32, %arg1: i32) -> (i32, i32) {
    %c0_i32 = arith.constant 0 : i32
    %c0_i32_0 = arith.constant 0 : i32
    return %arg0, %c0_i32 : i32, i32
  }
  func.func @transform_1(%arg0: i32, %arg1: i32) -> (i32, i32) {
    %c0_i32 = arith.constant 0 : i32
    %c0_i32_0 = arith.constant 0 : i32
    return %c0_i32, %arg1 : i32, i32
  }
  func.func @transform_2(%arg0: i32, %arg1: i32) -> (i32, i32) {
    %c0_i32 = arith.constant 0 : i32
    %c0_i32_0 = arith.constant 0 : i32
    return %c0_i32, %arg1 : i32, i32
  }
  func.func @transform_3(%arg0: i32, %arg1: i32) -> (i32, i32) {
    %c0_i32 = arith.constant 0 : i32
    %c0_i32_0 = arith.constant 0 : i32
    return %arg1, %c0_i32 : i32, i32
  }
  func.func @transform_4(%arg0: i32, %arg1: i32) -> (i32, i32) {
    %c0_i32 = arith.constant 0 : i32
    %c0_i32_0 = arith.constant 0 : i32
    %c0_i32_1 = arith.constant 0 : i32
    return %c0_i32, %c0_i32_0 : i32, i32
  }
  func.func @transform_5(%arg0: i32, %arg1: i32) -> (i32, i32) {
    %c0_i32 = arith.constant 0 : i32
    %c0_i32_0 = arith.constant 0 : i32
    return %arg0, %c0_i32 : i32, i32
  }
}

</mosaic_0001>

<llo_original>
// kernel: tpu_custom_call.1
$region0: #{tpu_custom_call.1}
  #allocation0 [shape = 'u32[]', space=smem, size = 0x4, offset = 0x4, fixed_abs, tag = 'smem constant byte address 0x4 - core index']
  #allocation1 [shape = 'u32[144,128]{1,0:T(1,128)}', space=vmem, size = 0x12000, scoped, tag = 'internal scratch']
  #allocation2 [shape = 'f32[16,128]{1,0:T(8,128)}', space=vmem, size = 0x2000, scoped, tag = 'scratch operand']
  %s0 = inlined_call_operand.hbm [shape: f32[16,128], index: 0, kind: input, shape index: {}]
  %s1 = inlined_call_operand.hbm [shape: f32[128,128], index: 1, kind: input, shape index: {}]
  %s2 = inlined_call_operand.vmem [shape: f32[1,128], index: 2, kind: input, shape index: {}]
  %s3 = inlined_call_operand.hbm [shape: f32[128,128], index: 3, kind: input, shape index: {}]
  %s4 = inlined_call_operand.vmem [shape: f32[1,128], index: 4, kind: input, shape index: {}]
  %s5 = inlined_call_operand.hbm [shape: f32[16,128], index: 5, kind: output, shape index: {}]
  %s6 = sld [smem:[#allocation0]]
  $region50: #{tpu_custom_call.1} parent=0
    _
  %s8 = ssub.s32 1, %s6
  %s9 = scalar_select 0, %s8, %s6
  $region1: #{tpu_custom_call.1} parent=0
    #allocation3 [shape = 'u8[8192]{0}', space=vmem, size = 0x2000, scoped, tag = 'input window, operand 0, single buffered']
    #allocation4 [shape = 's32[1]{0}', space=sflag, size = 0x4, scoped, tag = 'scoped memory for tpu_custom_call.1']
    #allocation5 [shape = 's32[1]{0}', space=sflag, size = 0x4, scoped, tag = 'scoped memory for tpu_custom_call.1']
    #allocation6 [shape = 'u8[65536]{0}', space=vmem, size = 0x10000, scoped, tag = 'input window, operand 1, single buffered']
    #allocation7 [shape = 's32[1]{0}', space=sflag, size = 0x4, scoped, tag = 'scoped memory for tpu_custom_call.1']
    #allocation8 [shape = 'u8[65536]{0}', space=vmem, size = 0x10000, scoped, tag = 'input window, operand 3, single buffered']
    #allocation9 [shape = 'u8[8192]{0}', space=vmem, size = 0x2000, scoped, tag = 'output window, operand 0, single buffered']
    %10 = vsyncpa [#allocation4], 0
    %11 = vsyncpa [#allocation7], 0
    %12 = vsyncpa [#allocation5], 0
    // Predicated region
    $region2: #{tpu_custom_call.1} parent=1 // pred_check
      _
    $region3: #{tpu_custom_call.1} parent=1 // pred_check_branch
      %14 = sbr.rel (0) target = $region5
    $region4: #{tpu_custom_call.1} parent=1 // pred_region
      %s16 = ssub.s32 256, 256
      %17 = vsyncadd [#allocation4], %s16
      %s18 = sshll.u32 [#allocation3], 4
      %s19 = int_to_ptr.vmem [resolvable:$true] %s18
      %24 = dma.hbm_to_vmem [thread:$0]  %s0, 256, %s19, [#allocation4], 128, 128, 8
    $region5: #{tpu_custom_call.1} parent=1 // pred_fallthru
      _
    // Predicated region
    $region6: #{tpu_custom_call.1} parent=1 // pred_check
      _
    $region7: #{tpu_custom_call.1} parent=1 // pred_check_branch
      %26 = sbr.rel (0) target = $region9
    $region8: #{tpu_custom_call.1} parent=1 // pred_region
      %s28 = ssub.s32 2048, 2048
      %29 = vsyncadd [#allocation7], %s28
      %s30 = sshll.u32 [#allocation6], 4
      %s31 = int_to_ptr.vmem [resolvable:$true] %s30
      %36 = dma.hbm_to_vmem [thread:$0]  %s1, 2048, %s31, [#allocation7], 128, 128, 8
    $region9: #{tpu_custom_call.1} parent=1 // pred_fallthru
      _
    // Predicated region
    $region10: #{tpu_custom_call.1} parent=1 // pred_check
      _
    $region11: #{tpu_custom_call.1} parent=1 // pred_check_branch
      %38 = sbr.rel (0) target = $region13
    $region12: #{tpu_custom_call.1} parent=1 // pred_region
      _
    $region13: #{tpu_custom_call.1} parent=1 // pred_fallthru
      _
    // Predicated region
    $region14: #{tpu_custom_call.1} parent=1 // pred_check
      _
    $region15: #{tpu_custom_call.1} parent=1 // pred_check_branch
      %40 = sbr.rel (0) target = $region17
    $region16: #{tpu_custom_call.1} parent=1 // pred_region
      %s42 = ssub.s32 2048, 2048
      %43 = vsyncadd [#allocation7], %s42
      %s44 = sshll.u32 [#allocation8], 4
      %s45 = int_to_ptr.vmem [resolvable:$true] %s44
      %50 = dma.hbm_to_vmem [thread:$0]  %s3, 2048, %s45, [#allocation7], 128, 128, 8
    $region17: #{tpu_custom_call.1} parent=1 // pred_fallthru
      _
    // Predicated region
    $region18: #{tpu_custom_call.1} parent=1 // pred_check
      _
    $region19: #{tpu_custom_call.1} parent=1 // pred_check_branch
      %52 = sbr.rel (0) target = $region21
    $region20: #{tpu_custom_call.1} parent=1 // pred_region
      _
    $region21: #{tpu_custom_call.1} parent=1 // pred_fallthru
      _
    // Predicated region
    $region22: #{tpu_custom_call.1} parent=1 // pred_check
      _
    $region23: #{tpu_custom_call.1} parent=1 // pred_check_branch
      %54 = sbr.rel (0) target = $region25
    $region24: #{tpu_custom_call.1} parent=1 // pred_region
      %55 = dma.done [#allocation4], 256
    $region25: #{tpu_custom_call.1} parent=1 // pred_fallthru
      _
    // Predicated region
    $region26: #{tpu_custom_call.1} parent=1 // pred_check
      _
    $region27: #{tpu_custom_call.1} parent=1 // pred_check_branch
      %57 = sbr.rel (0) target = $region29
    $region28: #{tpu_custom_call.1} parent=1 // pred_region
      %58 = dma.done [#allocation7], 2048
    $region29: #{tpu_custom_call.1} parent=1 // pred_fallthru
      _
    // Predicated region
    $region30: #{tpu_custom_call.1} parent=1 // pred_check
      _
    $region31: #{tpu_custom_call.1} parent=1 // pred_check_branch
      %60 = sbr.rel (0) target = $region33
    $region32: #{tpu_custom_call.1} parent=1 // pred_region
      %61 = dma.done [#allocation7], 2048
    $region33: #{tpu_custom_call.1} parent=1 // pred_fallthru
      _
    %p62 = scmp.eq.s32.totalorder 0, 0
    // Predicated region
    $region34: #{tpu_custom_call.1} parent=1 // pred_check
      %p63 = pneg %p62
    $region35: #{tpu_custom_call.1} parent=1 // pred_check_branch
      %65 = sbr.rel (%p63) target = $region37
    $region36: #{tpu_custom_call.1} parent=1 // pred_region
      %v66 = vld [vmem:[%s4] sm:$0x1]
      %v68 = vlaneseq
      %v69 = vshrl.u32 %v68, 7
      %v70 = vsub.s32 0, %v69
      %v71 = vrot.slane %v66, %v70
      %73 = vst [vmem:[#allocation2] sm:$0xff] %v71
      %74 = vst [vmem:[#allocation2 + $0x8] sm:$0xff] %v71
    $region37: #{tpu_custom_call.1} parent=1 // pred_fallthru
      _
    %v75 = vld [vmem:[#allocation3] sm:$0xff]
    %v76 = vld [vmem:[#allocation3 + $0x8] sm:$0xff]
    %v77 = vld [vmem:[#allocation6] sm:$0xff]
    %v78 = vld [vmem:[#allocation6 + $0x8] sm:$0xff]
    %v79 = vld [vmem:[#allocation6 + $0x10] sm:$0xff]
    %v80 = vld [vmem:[#allocation6 + $0x18] sm:$0xff]
    %v81 = vld [vmem:[#allocation6 + $0x20] sm:$0xff]
    %v82 = vld [vmem:[#allocation6 + $0x28] sm:$0xff]
    %v83 = vld [vmem:[#allocation6 + $0x30] sm:$0xff]
    %v84 = vld [vmem:[#allocation6 + $0x38] sm:$0xff]
    %v85 = vld [vmem:[#allocation6 + $0x40] sm:$0xff]
    %v86 = vld [vmem:[#allocation6 + $0x48] sm:$0xff]
    %v87 = vld [vmem:[#allocation6 + $0x50] sm:$0xff]
    %v88 = vld [vmem:[#allocation6 + $0x58] sm:$0xff]
    %v89 = vld [vmem:[#allocation6 + $0x60] sm:$0xff]
    %v90 = vld [vmem:[#allocation6 + $0x68] sm:$0xff]
    %v91 = vld [vmem:[#allocation6 + $0x70] sm:$0xff]
    %v92 = vld [vmem:[#allocation6 + $0x78] sm:$0xff]
    %v93 = vld [vmem:[%s2] sm:$0x1]
    %v95 = vlaneseq
    %v96 = vshrl.u32 %v95, 7
    %v97 = vsub.s32 0, %v96
    %v98 = vrot.slane %v93, %v97
    %100 = vmatprep.subr.mxu0 0.0
    %101 = vmatpush1.msra.mxu0 %v77
    %102 = vmatprep.subr.mxu0 0.0
    %103 = vmatpush1.msra.mxu0 %v78
    %104 = vmatprep.subr.mxu0 0.0
    %105 = vmatpush1.msra.mxu0 %v79
    %106 = vmatprep.subr.mxu0 0.0
    %107 = vmatpush1.msra.mxu0 %v80
    %108 = vmatprep.subr.mxu0 0.0
    %109 = vmatpush1.msra.mxu0 %v81
    %110 = vmatprep.subr.mxu0 0.0
    %111 = vmatpush1.msra.mxu0 %v82
    %112 = vmatprep.subr.mxu0 0.0
    %113 = vmatpush1.msra.mxu0 %v83
    %114 = vmatprep.subr.mxu0 0.0
    %115 = vmatpush1.msra.mxu0 %v84
    %116 = vmatprep.subr.mxu0 0.0
    %117 = vmatpush1.msra.mxu0 %v85
    %118 = vmatprep.subr.mxu0 0.0
    %119 = vmatpush1.msra.mxu0 %v86
    %120 = vmatprep.subr.mxu0 0.0
    %121 = vmatpush1.msra.mxu0 %v87
    %122 = vmatprep.subr.mxu0 0.0
    %123 = vmatpush1.msra.mxu0 %v88
    %124 = vmatprep.subr.mxu0 0.0
    %125 = vmatpush1.msra.mxu0 %v89
    %126 = vmatprep.subr.mxu0 0.0
    %127 = vmatpush1.msra.mxu0 %v90
    %128 = vmatprep.subr.mxu0 0.0
    %129 = vmatpush1.msra.mxu0 %v91
    %130 = vmatprep.subr.mxu0 0.0
    %131 = vmatpush1.msra.mxu0 %v92
    %132 = vmatprep.subr.mxu0 0.0
    %133 = vmatpush1.msra.mxu0 0.0
    %134 = vmatprep.subr.mxu0 0.0
    %135 = vmatpush1.msra.mxu0 0.0
    %136 = vmatprep.subr.mxu0 0.0
    %137 = vmatpush1.msra.mxu0 0.0
    %138 = vmatprep.subr.mxu0 0.0
    %139 = vmatpush1.msra.mxu0 0.0
    %140 = vmatprep.subr.mxu0 0.0
    %141 = vmatpush1.msra.mxu0 0.0
    %142 = vmatprep.subr.mxu0 0.0
    %143 = vmatpush1.msra.mxu0 0.0
    %144 = vmatprep.subr.mxu0 0.0
    %145 = vmatpush1.msra.mxu0 0.0
    %146 = vmatprep.subr.mxu0 0.0
    %147 = vmatpush1.msra.mxu0 0.0
    %148 = vmatprep.subr.mxu0 0.0
    %149 = vmatpush1.msra.mxu0 0.0
    %150 = vmatprep.subr.mxu0 0.0
    %151 = vmatpush1.msra.mxu0 0.0
    %152 = vmatprep.subr.mxu0 0.0
    %153 = vmatpush1.msra.mxu0 0.0
    %154 = vmatprep.subr.mxu0 0.0
    %155 = vmatpush1.msra.mxu0 0.0
    %156 = vmatprep.subr.mxu0 0.0
    %157 = vmatpush1.msra.mxu0 0.0
    %158 = vmatprep.subr.mxu0 0.0
    %159 = vmatpush1.msra.mxu0 0.0
    %160 = vmatprep.subr.mxu0 0.0
    %161 = vmatpush1.msra.mxu0 0.0
    %162 = vmatprep.subr.mxu0 0.0
    %163 = vmatpush1.msra.mxu0 0.0
    %164 = vmatprep.mubr.f32.mxu0 0.0
    %165 = vmatmul.mubr.f32.gmra.mrb[0].mxu0 %v75
    %v166 = vpop.f32.mrb[0].mxu0
    %v167 = vadd.f32 %v98, %v166
    %v168 = vpop.f32.mrb[0].mxu0
    %169 = vmatprep.mubr.f32.mxu0 0.0
    %170 = vmatmul.mubr.f32.gmra.mrb[0].mxu0 %v76
    %v171 = vpop.f32.mrb[0].mxu0
    %v172 = vadd.f32 %v98, %v171
    %v173 = vpop.f32.mrb[0].mxu0
    %174 = vdwg.mxu0
    %v175 = vmax.f32 %v167, 0.0
    %v176 = vmax.f32 %v172, 0.0
    %v177 = vld [vmem:[#allocation2] sm:$0xff]
    %v178 = vld [vmem:[#allocation2 + $0x8] sm:$0xff]
    %v179 = vld [vmem:[#allocation8] sm:$0xff]
    %v180 = vld [vmem:[#allocation8 + $0x8] sm:$0xff]
    %v181 = vld [vmem:[#allocation8 + $0x10] sm:$0xff]
    %v182 = vld [vmem:[#allocation8 + $0x18] sm:$0xff]
    %v183 = vld [vmem:[#allocation8 + $0x20] sm:$0xff]
    %v184 = vld [vmem:[#allocation8 + $0x28] sm:$0xff]
    %v185 = vld [vmem:[#allocation8 + $0x30] sm:$0xff]
    %v186 = vld [vmem:[#allocation8 + $0x38] sm:$0xff]
    %v187 = vld [vmem:[#allocation8 + $0x40] sm:$0xff]
    %v188 = vld [vmem:[#allocation8 + $0x48] sm:$0xff]
    %v189 = vld [vmem:[#allocation8 + $0x50] sm:$0xff]
    %v190 = vld [vmem:[#allocation8 + $0x58] sm:$0xff]
    %v191 = vld [vmem:[#allocation8 + $0x60] sm:$0xff]
    %v192 = vld [vmem:[#allocation8 + $0x68] sm:$0xff]
    %v193 = vld [vmem:[#allocation8 + $0x70] sm:$0xff]
    %v194 = vld [vmem:[#allocation8 + $0x78] sm:$0xff]
    %195 = vmatprep.subr.mxu0 0.0
    %196 = vmatpush1.msra.mxu0 %v179
    %197 = vmatprep.subr.mxu0 0.0
    %198 = vmatpush1.msra.mxu0 %v180
    %199 = vmatprep.subr.mxu0 0.0
    %200 = vmatpush1.msra.mxu0 %v181
    %201 = vmatprep.subr.mxu0 0.0
    %202 = vmatpush1.msra.mxu0 %v182
    %203 = vmatprep.subr.mxu0 0.0
    %204 = vmatpush1.msra.mxu0 %v183
    %205 = vmatprep.subr.mxu0 0.0
    %206 = vmatpush1.msra.mxu0 %v184
    %207 = vmatprep.subr.mxu0 0.0
    %208 = vmatpush1.msra.mxu0 %v185
    %209 = vmatprep.subr.mxu0 0.0
    %210 = vmatpush1.msra.mxu0 %v186
    %211 = vmatprep.subr.mxu0 0.0
    %212 = vmatpush1.msra.mxu0 %v187
    %213 = vmatprep.subr.mxu0 0.0
    %214 = vmatpush1.msra.mxu0 %v188
    %215 = vmatprep.subr.mxu0 0.0
    %216 = vmatpush1.msra.mxu0 %v189
    %217 = vmatprep.subr.mxu0 0.0
    %218 = vmatpush1.msra.mxu0 %v190
    %219 = vmatprep.subr.mxu0 0.0
    %220 = vmatpush1.msra.mxu0 %v191
    %221 = vmatprep.subr.mxu0 0.0
    %222 = vmatpush1.msra.mxu0 %v192
    %223 = vmatprep.subr.mxu0 0.0
    %224 = vmatpush1.msra.mxu0 %v193
    %225 = vmatprep.subr.mxu0 0.0
    %226 = vmatpush1.msra.mxu0 %v194
    %227 = vmatprep.subr.mxu0 0.0
    %228 = vmatpush1.msra.mxu0 0.0
    %229 = vmatprep.subr.mxu0 0.0
    %230 = vmatpush1.msra.mxu0 0.0
    %231 = vmatprep.subr.mxu0 0.0
    %232 = vmatpush1.msra.mxu0 0.0
    %233 = vmatprep.subr.mxu0 0.0
    %234 = vmatpush1.msra.mxu0 0.0
    %235 = vmatprep.subr.mxu0 0.0
    %236 = vmatpush1.msra.mxu0 0.0
    %237 = vmatprep.subr.mxu0 0.0
    %238 = vmatpush1.msra.mxu0 0.0
    %239 = vmatprep.subr.mxu0 0.0
    %240 = vmatpush1.msra.mxu0 0.0
    %241 = vmatprep.subr.mxu0 0.0
    %242 = vmatpush1.msra.mxu0 0.0
    %243 = vmatprep.subr.mxu0 0.0
    %244 = vmatpush1.msra.mxu0 0.0
    %245 = vmatprep.subr.mxu0 0.0
    %246 = vmatpush1.msra.mxu0 0.0
    %247 = vmatprep.subr.mxu0 0.0
    %248 = vmatpush1.msra.mxu0 0.0
    %249 = vmatprep.subr.mxu0 0.0
    %250 = vmatpush1.msra.mxu0 0.0
    %251 = vmatprep.subr.mxu0 0.0
    %252 = vmatpush1.msra.mxu0 0.0
    %253 = vmatprep.subr.mxu0 0.0
    %254 = vmatpush1.msra.mxu0 0.0
    %255 = vmatprep.subr.mxu0 0.0
    %256 = vmatpush1.msra.mxu0 0.0
    %257 = vmatprep.subr.mxu0 0.0
    %258 = vmatpush1.msra.mxu0 0.0
    %259 = vmatprep.mubr.f32.mxu0 0.0
    %260 = vmatmul.mubr.f32.gmra.mrb[0].mxu0 %v175
    %v261 = vpop.f32.mrb[0].mxu0
    %v262 = vadd.f32 0.0, %v261
    %v263 = vpop.f32.mrb[0].mxu0
    %264 = vmatprep.mubr.f32.mxu0 0.0
    %265 = vmatmul.mubr.f32.gmra.mrb[0].mxu0 %v176
    %v266 = vpop.f32.mrb[0].mxu0
    %v267 = vadd.f32 0.0, %v266
    %v268 = vpop.f32.mrb[0].mxu0
    %269 = vdwg.mxu0
    %v270 = vadd.f32 %v177, %v262
    %v271 = vadd.f32 %v178, %v267
    %272 = vst [vmem:[#allocation2] sm:$0xff] %v270
    %273 = vst [vmem:[#allocation2 + $0x8] sm:$0xff] %v271
    // Predicated region
    $region38: #{tpu_custom_call.1} parent=1 // pred_check
      %p274 = pneg %p62
    $region39: #{tpu_custom_call.1} parent=1 // pred_check_branch
      %276 = sbr.rel (%p274) target = $region41
    $region40: #{tpu_custom_call.1} parent=1 // pred_region
      %v277 = vld [vmem:[#allocation2] sm:$0xff]
      %v278 = vld [vmem:[#allocation2 + $0x8] sm:$0xff]
      %279 = vst [vmem:[#allocation9] sm:$0xff] %v277
      %280 = vst [vmem:[#allocation9 + $0x8] sm:$0xff] %v278
    $region41: #{tpu_custom_call.1} parent=1 // pred_fallthru
      _
    // Predicated region
    $region42: #{tpu_custom_call.1} parent=1 // pred_check
      _
    $region43: #{tpu_custom_call.1} parent=1 // pred_check_branch
      %282 = sbr.rel (0) target = $region45
    $region44: #{tpu_custom_call.1} parent=1 // pred_region
      %s284 = ssub.s32 256, 256
      %285 = vsyncadd [#allocation5], %s284
      %s286 = sshll.u32 [#allocation9], 4
      %s287 = int_to_ptr.vmem [resolvable:$true] %s286
      %292 = dma.vmem_to_hbm [thread:$0]  %s287, 256, %s5, [#allocation5], 128, 128, 8
    $region45: #{tpu_custom_call.1} parent=1 // pred_fallthru
      _
    // Predicated region
    $region46: #{tpu_custom_call.1} parent=1 // pred_check
      _
    $region47: #{tpu_custom_call.1} parent=1 // pred_check_branch
      %294 = sbr.rel (0) target = $region49
    $region48: #{tpu_custom_call.1} parent=1 // pred_region
      %295 = dma.done [#allocation5], 256
    $region49: #{tpu_custom_call.1} parent=1 // pred_fallthru
      _
    %296 = vsyncpa [#allocation4], 1
    %297 = vsyncpa [#allocation7], 1
    %298 = vsyncpa [#allocation5], 1

</llo_original>
